<compile_context>
chip_gen: v7x
topology: tpu7x:2x2x1
jax: 0.10.0
libtpu: 0.0.40
codegen_flags: <defaults>
</compile_context>

<pallas_src>
import functools

import jax
import jax.numpy as jnp
from jax.experimental import pallas as pl
from jax.experimental.pallas import tpu as pltpu

_LANE = 128
_SUBLANE_F32 = 8                  # sublanes of a (8,128) f32 vreg tile
_MAX_COLS = 32768                 # widest lane dim tried for the 2-D view
_TARGET_BLOCK_BYTES = 8 << 20     # ~8 MiB blocks: per-step ~0.35us cost stays small even at v7x BW
_MIN_SPLIT_BYTES = 4 << 20        # below this, splitting across TensorCores is pure overhead


def _sublane_for(dtype) -> int:
    """Packed sublane granularity: 8 rows for 4-byte, 16 for 2-byte, 32 for 1-byte dtypes."""
    itemsize = jnp.dtype(dtype).itemsize
    return _SUBLANE_F32 * max(1, 4 // itemsize)


@functools.lru_cache(maxsize=None)
def _num_tensorcores() -> int:
    """TensorCores a 'parallel' grid axis can be sharded across (v7x/v4/v5p: 2, else 1)."""
    try:
        kind = (getattr(jax.devices()[0], "device_kind", "") or "").lower()
    except Exception:
        return 1
    if "v7" in kind or "v4" in kind or "v5p" in kind:
        return 2
    return 1


def _pick_cols(n: int, sublane: int) -> int:
    """Largest multiple of 128 dividing n whose row count stays sublane-aligned."""
    for c in range(_MAX_COLS, _LANE - 1, -_LANE):
        if n % c == 0 and (n // c) % sublane == 0:
            return c
    return _LANE  # guaranteed fallback when n % (sublane * 128) == 0


def _mul_add_kernel(x_ref, o_ref):
    # y = x * 2 + 1; Python-int literals keep the input dtype (weak typing).
    o_ref[...] = x_ref[...] * 2 + 1


def _run_2d(x_flat, n, dtype, in_place):
    """Run the elementwise kernel on a flat buffer with n % (sublane*128) == 0."""
    sublane = _sublane_for(dtype)
    itemsize = jnp.dtype(dtype).itemsize
    cols = _pick_cols(n, sublane)
    rows = n // cols
    x2d = x_flat.reshape(rows, cols)  # contiguous reshape: no HBM copy

    # ~8 MiB blocks; tile_rows rounded to the packed sublane so stores stay unmasked.
    row_bytes = cols * itemsize
    tile_rows = max(sublane, (_TARGET_BLOCK_BYTES // row_bytes) // sublane * sublane)
    tile_rows = min(tile_rows, rows)

    # Multi-TC chips (v7x): ensure >= 2 grid steps per core so each core's in/out DMAs
    # are double-buffered. Single-TC chips (v5e/v6e) run the grid as a sequential loop,
    # so never force a split there (extra steps would be pure ~0.35us overhead).
    num_tc = _num_tensorcores()
    if num_tc > 1 and n * itemsize >= _MIN_SPLIT_BYTES:
        min_steps = 2 * num_tc
        cand = (rows // min_steps) // sublane * sublane
        if cand >= sublane:
            tile_rows = min(tile_rows, cand)

    grid = (pl.cdiv(rows, tile_rows),)  # partial last block is masked by Pallas

    block_bytes = tile_rows * cols * itemsize
    # in + out, double-buffered (4 live blocks) + headroom; stays under v7x's 64 MiB VMEM.
    vmem_limit = min(64 << 20, max(32 << 20, 4 * block_bytes + (8 << 20)))

    out2d = pl.pallas_call(
        _mul_add_kernel,
        out_shape=jax.ShapeDtypeStruct((rows, cols), dtype),
        grid_spec=pltpu.PrefetchScalarGridSpec(
            num_scalar_prefetch=0,
            grid=grid,
            in_specs=[pl.BlockSpec((tile_rows, cols), lambda i: (i, 0))],
            out_specs=pl.BlockSpec((tile_rows, cols), lambda i: (i, 0)),
        ),
        input_output_aliases=({0: 0} if in_place else {}),
        compiler_params=pltpu.CompilerParams(
            dimension_semantics=("parallel",),  # megacore sharding on v7x
            vmem_limit_bytes=vmem_limit,
        ),
    )(x2d)
    return out2d.reshape(-1)  # contiguous reshape: no HBM copy


def mul2_add1(x, *, in_place=False):
    """y = x*2 + 1, matching the PyTorch module's forward.

    in_place=True aliases the output onto the input buffer (caller must donate x,
    e.g. jax.jit(..., donate_argnums=0)); default is False so undonated inputs never
    trigger a hidden defensive copy.
    """
    shape = x.shape
    dtype = x.dtype
    n = x.size
    if n == 0:
        return x

    sublane = _sublane_for(dtype)
    align = sublane * _LANE
    x_flat = x.reshape(-1)  # contiguous reshape: no HBM copy

    if n % align == 0:
        # Common case for NN tensors: exactly one HBM read + one HBM write.
        return _run_2d(x_flat, n, dtype, in_place).reshape(shape)

    # Rare unaligned sizes: Pallas kernel on the aligned prefix, tiny fused XLA op on
    # the (<align-element) tail. No full-tensor pad is materialized.
    # TODO(synk): mask the ragged tail inside the kernel (or write in place via
    # input_output_aliases) to also drop the prefix-slice and concatenate copies.
    n_main = (n // align) * align
    if n_main == 0:
        return (x_flat * 2 + 1).reshape(shape)  # tiny tensor: single fused op
    y_main = _run_2d(x_flat[:n_main], n_main, dtype, False)
    y_tail = x_flat[n_main:] * 2 + 1
    return jnp.concatenate([y_main, y_tail]).reshape(shape)


if __name__ == "__main__":
    key = jax.random.PRNGKey(0)
    x = jax.random.normal(key, (2, 4, 16, 16), dtype=jnp.float32)

    y = mul2_add1(x)
    jax.block_until_ready(y)

    # Reference: result = x*2, then each slice along dim 0 gets +1 exactly once.
    y_ref = x * 2 + 1
    assert y.shape == x.shape and y.dtype == x.dtype
    assert jnp.allclose(y, y_ref, atol=1e-6, rtol=1e-6)
    print("KERNEL_OK")
</pallas_src>

<mosaic_0001>
module attributes {stable_mosaic.version = 11 : i64} {
  func.func @_mul_add_kernel(%arg0: i32, %arg1: memref<8x256xf32, #tpu.memory_space<vmem>>, %arg2: memref<8x256xf32, #tpu.memory_space<vmem>>) attributes {dimension_semantics = [#tpu.dimension_semantics<parallel>], iteration_bounds = array<i64: 1>, scalar_prefetch = 0 : i64, scratch_operands = 0 : i64, tpu.core_type = #tpu.core_type<tc>, window_params = [{transform_indices = @transform_0, window_bounds = array<i64: 8, 256>}, {transform_indices = @transform_1, window_bounds = array<i64: 8, 256>}]} {
    %c0 = arith.constant 0 : index
    %c0_0 = arith.constant 0 : index
    %0 = vector.load %arg1[%c0, %c0_0] : memref<8x256xf32, #tpu.memory_space<vmem>>, vector<8x256xf32>
    %cst = arith.constant 2.000000e+00 : f32
    %1 = vector.broadcast %cst : f32 to vector<8x256xf32>
    %2 = arith.mulf %0, %1 : vector<8x256xf32>
    %cst_1 = arith.constant 1.000000e+00 : f32
    %3 = vector.broadcast %cst_1 : f32 to vector<8x256xf32>
    %4 = arith.addf %2, %3 : vector<8x256xf32>
    %c0_2 = arith.constant 0 : index
    %c0_3 = arith.constant 0 : index
    %5 = vector.load %arg2[%c0_2, %c0_3] : memref<8x256xf32, #tpu.memory_space<vmem>>, vector<8x256xf32>
    tpu.vector_store %arg2[%c0_2, %c0_3], %4 {strides = array<i32>} : memref<8x256xf32, #tpu.memory_space<vmem>>, vector<8x256xf32>,
    return
  }
  func.func @transform_0(%arg0: i32) -> (i32, i32) {
    %c0_i32 = arith.constant 0 : i32
    %c0_i32_0 = arith.constant 0 : i32
    return %arg0, %c0_i32 : i32, i32
  }
  func.func @transform_1(%arg0: i32) -> (i32, i32) {
    %c0_i32 = arith.constant 0 : i32
    %c0_i32_0 = arith.constant 0 : i32
    return %arg0, %c0_i32 : i32, i32
  }
}

</mosaic_0001>

<llo_original>
// kernel: tpu_custom_call.1
$region0: #{tpu_custom_call.1}
  #allocation0 [shape = 'u32[]', space=smem, size = 0x4, offset = 0x4, fixed_abs, tag = 'smem constant byte address 0x4 - core index']
  #allocation1 [shape = 'u32[144,128]{1,0:T(1,128)}', space=vmem, size = 0x12000, scoped, tag = 'internal scratch']
  %s0 = inlined_call_operand.hbm [shape: f32[8,256], index: 0, kind: input, shape index: {}]
  %s1 = inlined_call_operand.hbm [shape: f32[8,256], index: 1, kind: output, shape index: {}]
  %s2 = sld [smem:[#allocation0]]
  $region18: #{tpu_custom_call.1} parent=0
    _
  %s4 = ssub.s32 1, %s2
  %s5 = scalar_select 0, %s4, %s2
  $region1: #{tpu_custom_call.1} parent=0
    #allocation2 [shape = 'u8[8192]{0}', space=vmem, size = 0x2000, scoped, tag = 'input window, operand 0, single buffered']
    #allocation3 [shape = 's32[1]{0}', space=sflag, size = 0x4, scoped, tag = 'scoped memory for tpu_custom_call.1']
    #allocation4 [shape = 's32[1]{0}', space=sflag, size = 0x4, scoped, tag = 'scoped memory for tpu_custom_call.1']
    #allocation5 [shape = 'u8[8192]{0}', space=vmem, size = 0x2000, scoped, tag = 'output window, operand 0, single buffered']
    %6 = vsyncpa [#allocation3], 0
    %7 = vsyncpa [#allocation4], 0
    // Predicated region
    $region2: #{tpu_custom_call.1} parent=1 // pred_check
      _
    $region3: #{tpu_custom_call.1} parent=1 // pred_check_branch
      %9 = sbr.rel (0) target = $region5
    $region4: #{tpu_custom_call.1} parent=1 // pred_region
      %s11 = ssub.s32 256, 256
      %12 = vsyncadd [#allocation3], %s11
      %s14 = sshll.u32 [#allocation2], 4
      %s15 = int_to_ptr.vmem [resolvable:$true] %s14
      %17 = dma.hbm_to_vmem [thread:$0]  %s0, 256, %s15, [#allocation3]
    $region5: #{tpu_custom_call.1} parent=1 // pred_fallthru
      _
    // Predicated region
    $region6: #{tpu_custom_call.1} parent=1 // pred_check
      _
    $region7: #{tpu_custom_call.1} parent=1 // pred_check_branch
      %19 = sbr.rel (0) target = $region9
    $region8: #{tpu_custom_call.1} parent=1 // pred_region
      %20 = dma.done [#allocation3], 256
    $region9: #{tpu_custom_call.1} parent=1 // pred_fallthru
      _
    %v21 = vld [vmem:[#allocation2] sm:$0xff]
    %v22 = vld [vmem:[#allocation2 + $0x8] sm:$0xff]
    %v23 = vmul.f32 %v21, 2.0
    %v24 = vmul.f32 %v22, 2.0
    %v25 = vadd.f32 %v23, 1.0
    %v26 = vadd.f32 %v24, 1.0
    %27 = vst [vmem:[#allocation5] sm:$0xff] %v25
    %28 = vst [vmem:[#allocation5 + $0x8] sm:$0xff] %v26
    // Predicated region
    $region10: #{tpu_custom_call.1} parent=1 // pred_check
      _
    $region11: #{tpu_custom_call.1} parent=1 // pred_check_branch
      %30 = sbr.rel (0) target = $region13
    $region12: #{tpu_custom_call.1} parent=1 // pred_region
      %s32 = ssub.s32 256, 256
      %33 = vsyncadd [#allocation4], %s32
      %s35 = sshll.u32 [#allocation5], 4
      %s36 = int_to_ptr.vmem [resolvable:$true] %s35
      %38 = dma.vmem_to_hbm [thread:$0]  %s36, 256, %s1, [#allocation4]
    $region13: #{tpu_custom_call.1} parent=1 // pred_fallthru
      _
    // Predicated region
    $region14: #{tpu_custom_call.1} parent=1 // pred_check
      _
    $region15: #{tpu_custom_call.1} parent=1 // pred_check_branch
      %40 = sbr.rel (0) target = $region17
    $region16: #{tpu_custom_call.1} parent=1 // pred_region
      %41 = dma.done [#allocation4], 256
    $region17: #{tpu_custom_call.1} parent=1 // pred_fallthru
      _
    %42 = vsyncpa [#allocation3], 1
    %43 = vsyncpa [#allocation4], 1

</llo_original>
